<compile_context>
chip_gen: v7x
topology: tpu7x:2x2x1
jax: 0.10.0
libtpu: 0.0.40
codegen_flags: <defaults>
</compile_context>

<pallas_src>
import jax
import jax.numpy as jnp
from jax.experimental import pallas as pl
from jax.experimental.pallas import tpu as pltpu

# ---- problem sizes (small, consistent with the module's forward) ----
B = 8                       # batch
N_KP = 68                   # face keypoints
KP_D = 2                    # 2D keypoints
KP_FLAT = N_KP * KP_D       # 136
N_BETA = 10                 # shape betas
N_EXPR = 10                 # expression coeffs
N_JAW = 3                   # jaw pose (axis-angle)
POSE_DIM = 66               # pose vector, jaw lives at [:, 63:66]
JAW_COL = 63                # jaw outputs placed at W2 columns 63:66 (== pose lanes)

HIDDEN = 128
DOUT_PAD = 128              # lane-width layer-2 output (expr at 0:10, jaw at 63:66)


def _predictor_kernel(kp_ref, beta_ref, w1kp_ref, w1beta_ref, b1_ref, w2_ref, b2_ref,
                      pose_ref, expr_ref, jaw_ref, pose_out_ref):
    # layer 1: split-input matmul (replaces wrapper-side concat + zero-pad)
    kp = kp_ref[...].astype(jnp.bfloat16)                       # [B, 136]
    bt = beta_ref[...].astype(jnp.bfloat16)                     # [B, 10]
    h = (jnp.dot(kp, w1kp_ref[...], preferred_element_type=jnp.float32)
         + jnp.dot(bt, w1beta_ref[...], preferred_element_type=jnp.float32)
         + b1_ref[...])                                         # [B, HIDDEN] f32
    h = jnp.maximum(h, 0.0)                                     # ReLU (f32 epilogue)

    # layer 2: jaw weights live in columns 63:66 so jaw lands in the same lanes it
    # occupies inside `pose` -> pose update needs no cross-lane move.
    y = jnp.dot(h.astype(jnp.bfloat16), w2_ref[...],
                preferred_element_type=jnp.float32) + b2_ref[...]   # [B, 128] f32

    expr_ref[...] = y[:, :N_EXPR]                               # [B, 10]
    jaw_ref[...] = y[:, JAW_COL:JAW_COL + N_JAW]                # [B, 3]

    # pose_pred = pose.clone(); pose_pred[:, 63:66] = jaw_pose_pred
    cols = jax.lax.broadcasted_iota(jnp.int32, pose_ref.shape, 1)
    jaw_mask = (cols >= JAW_COL) & (cols < JAW_COL + N_JAW)
    pose_out_ref[...] = jnp.where(jaw_mask, y[:, :POSE_DIM], pose_ref[...])


def runner_forward(keypoints, beta, pose, params):
    """Returns dict with expression_pred [B,10], jaw_pose_pred [B,3], pose_pred [B,66]."""
    w1_kp, w1_beta, b1, w2, b2 = params
    bsz = keypoints.shape[0]

    kp_flat = keypoints.reshape(bsz, KP_FLAT).astype(jnp.float32)   # [B, 136]
    beta_f = beta.astype(jnp.float32)
    pose_f = pose.astype(jnp.float32)

    vmem = pl.BlockSpec(memory_space=pltpu.MemorySpace.VMEM)

    in_bytes = (bsz * KP_FLAT * 4 + bsz * N_BETA * 4
                + KP_FLAT * HIDDEN * 2 + N_BETA * HIDDEN * 2 + HIDDEN * 4
                + HIDDEN * DOUT_PAD * 2 + DOUT_PAD * 4
                + bsz * POSE_DIM * 4)
    out_bytes = bsz * (N_EXPR + N_JAW + POSE_DIM) * 4
    flops = 2 * bsz * (KP_FLAT * HIDDEN + N_BETA * HIDDEN + HIDDEN * DOUT_PAD)

    expr, jaw, pose_pred = pl.pallas_call(
        _predictor_kernel,
        in_specs=[vmem] * 8,
        out_specs=[vmem] * 3,
        out_shape=[
            jax.ShapeDtypeStruct((bsz, N_EXPR), jnp.float32),
            jax.ShapeDtypeStruct((bsz, N_JAW), jnp.float32),
            jax.ShapeDtypeStruct((bsz, POSE_DIM), jnp.float32),
        ],
        cost_estimate=pl.CostEstimate(
            flops=flops, transcendentals=0, bytes_accessed=in_bytes + out_bytes),
    )(kp_flat, beta_f, w1_kp, w1_beta, b1, w2, b2, pose_f)

    return {
        "expression_pred": expr,
        "jaw_pose_pred": jaw,
        "pose_pred": pose_pred,
    }


def runner_forward_ref(keypoints, beta, pose, params):
    """Pure-JAX reference with identical dtype handling."""
    w1_kp, w1_beta, b1, w2, b2 = params
    bsz = keypoints.shape[0]
    kp = keypoints.reshape(bsz, KP_FLAT).astype(jnp.bfloat16)
    bt = beta.astype(jnp.bfloat16)
    h = (jnp.dot(kp, w1_kp, preferred_element_type=jnp.float32)
         + jnp.dot(bt, w1_beta, preferred_element_type=jnp.float32) + b1)
    h = jnp.maximum(h, 0.0)
    y = jnp.dot(h.astype(jnp.bfloat16), w2, preferred_element_type=jnp.float32) + b2
    expr = y[:, :N_EXPR]
    jaw = y[:, JAW_COL:JAW_COL + N_JAW]
    pose_pred = pose.astype(jnp.float32).at[:, 63:66].set(jaw)
    return {"expression_pred": expr, "jaw_pose_pred": jaw, "pose_pred": pose_pred}


def init_params(key):
    """Deterministic MLP parameters; W1 split (kp/beta), jaw weights at W2 cols 63:66."""
    k1, k2, k3, k4, k5 = jax.random.split(key, 5)
    w1_kp = (jax.random.normal(k1, (KP_FLAT, HIDDEN), jnp.float32) * 0.02
             ).astype(jnp.bfloat16)
    w1_beta = (jax.random.normal(k2, (N_BETA, HIDDEN), jnp.float32) * 0.02
               ).astype(jnp.bfloat16)
    b1 = jax.random.normal(k5, (1, HIDDEN), jnp.float32) * 0.01

    w2_expr = jax.random.normal(k3, (HIDDEN, N_EXPR), jnp.float32) * 0.02
    w2_jaw = jax.random.normal(k4, (HIDDEN, N_JAW), jnp.float32) * 0.02
    w2 = jnp.zeros((HIDDEN, DOUT_PAD), jnp.float32)
    w2 = w2.at[:, :N_EXPR].set(w2_expr)
    w2 = w2.at[:, JAW_COL:JAW_COL + N_JAW].set(w2_jaw)
    w2 = w2.astype(jnp.bfloat16)
    b2 = jnp.zeros((1, DOUT_PAD), jnp.float32)
    return w1_kp, w1_beta, b1, w2, b2


if __name__ == "__main__":
    key = jax.random.PRNGKey(0)
    k_kp, k_beta, k_pose, k_params = jax.random.split(key, 4)

    keypoints = jax.random.normal(k_kp, (B, N_KP, KP_D), jnp.float32)
    beta = jax.random.normal(k_beta, (B, N_BETA), jnp.float32)
    pose = jax.random.normal(k_pose, (B, POSE_DIM), jnp.float32)
    params = init_params(k_params)

    fwd = jax.jit(runner_forward)
    out = fwd(keypoints, beta, pose, params)
    jax.block_until_ready(out)

    # shape / clone-then-overwrite semantics
    assert out["expression_pred"].shape == (B, N_EXPR)
    assert out["jaw_pose_pred"].shape == (B, N_JAW)
    assert out["pose_pred"].shape == (B, POSE_DIM)
    assert bool(jnp.allclose(out["pose_pred"][:, :JAW_COL], pose[:, :JAW_COL]))
    assert bool(jnp.allclose(out["pose_pred"][:, JAW_COL:JAW_COL + N_JAW],
                             out["jaw_pose_pred"]))

    # numeric check vs pure-JAX reference (same bf16/f32 mixed precision)
    ref = runner_forward_ref(keypoints, beta, pose, params)
    for name in ("expression_pred", "jaw_pose_pred", "pose_pred"):
        assert bool(jnp.allclose(out[name], ref[name], rtol=1e-2, atol=1e-3)), name

    print("KERNEL_OK")
</pallas_src>

<mosaic_0001>
module attributes {stable_mosaic.version = 11 : i64} {
  func.func @_predictor_kernel(%arg0: memref<8x136xf32, #tpu.memory_space<vmem>>, %arg1: memref<8x10xf32, #tpu.memory_space<vmem>>, %arg2: memref<136x128xbf16, #tpu.memory_space<vmem>>, %arg3: memref<10x128xbf16, #tpu.memory_space<vmem>>, %arg4: memref<1x128xf32, #tpu.memory_space<vmem>>, %arg5: memref<128x128xbf16, #tpu.memory_space<vmem>>, %arg6: memref<1x128xf32, #tpu.memory_space<vmem>>, %arg7: memref<8x66xf32, #tpu.memory_space<vmem>>, %arg8: memref<8x10xf32, #tpu.memory_space<vmem>>, %arg9: memref<8x3xf32, #tpu.memory_space<vmem>>, %arg10: memref<8x66xf32, #tpu.memory_space<vmem>>) attributes {dimension_semantics = [], scalar_prefetch = 0 : i64, scratch_operands = 0 : i64, tpu.core_type = #tpu.core_type<tc>} {
    %c0 = arith.constant 0 : index
    %c0_0 = arith.constant 0 : index
    %0 = vector.load %arg0[%c0, %c0_0] : memref<8x136xf32, #tpu.memory_space<vmem>>, vector<8x136xf32>
    %1 = arith.truncf %0 : vector<8x136xf32> to vector<8x136xbf16>
    %c0_1 = arith.constant 0 : index
    %c0_2 = arith.constant 0 : index
    %2 = vector.load %arg1[%c0_1, %c0_2] : memref<8x10xf32, #tpu.memory_space<vmem>>, vector<8x10xf32>
    %3 = arith.truncf %2 : vector<8x10xf32> to vector<8x10xbf16>
    %c0_3 = arith.constant 0 : index
    %c0_4 = arith.constant 0 : index
    %4 = vector.load %arg2[%c0_3, %c0_4] : memref<136x128xbf16, #tpu.memory_space<vmem>>, vector<136x128xbf16>
    %cst = arith.constant dense<0.000000e+00> : vector<8x128xf32>
    %5 = tpu.matmul %1, %4, %cst {dimension_numbers = #tpu.dot_dimension_numbers<[1], [0], [0], [1], [0, 0, 1, 1], [], []>} : vector<8x136xbf16>, vector<136x128xbf16>, vector<8x128xf32> -> vector<8x128xf32>
    %c0_5 = arith.constant 0 : index
    %c0_6 = arith.constant 0 : index
    %6 = vector.load %arg3[%c0_5, %c0_6] : memref<10x128xbf16, #tpu.memory_space<vmem>>, vector<10x128xbf16>
    %cst_7 = arith.constant dense<0.000000e+00> : vector<8x128xf32>
    %7 = tpu.matmul %3, %6, %cst_7 {dimension_numbers = #tpu.dot_dimension_numbers<[1], [0], [0], [1], [0, 0, 1, 1], [], []>} : vector<8x10xbf16>, vector<10x128xbf16>, vector<8x128xf32> -> vector<8x128xf32>
    %8 = arith.addf %5, %7 : vector<8x128xf32>
    %c0_8 = arith.constant 0 : index
    %c0_9 = arith.constant 0 : index
    %9 = vector.load %arg4[%c0_8, %c0_9] : memref<1x128xf32, #tpu.memory_space<vmem>>, vector<1x128xf32>
    %10 = vector.broadcast %9 : vector<1x128xf32> to vector<8x128xf32>
    %11 = arith.addf %8, %10 : vector<8x128xf32>
    %cst_10 = arith.constant 0.000000e+00 : f32
    %12 = vector.broadcast %cst_10 : f32 to vector<8x128xf32>
    %13 = arith.maximumf %11, %12 : vector<8x128xf32>
    %14 = arith.truncf %13 : vector<8x128xf32> to vector<8x128xbf16>
    %c0_11 = arith.constant 0 : index
    %c0_12 = arith.constant 0 : index
    %15 = vector.load %arg5[%c0_11, %c0_12] : memref<128x128xbf16, #tpu.memory_space<vmem>>, vector<128x128xbf16>
    %cst_13 = arith.constant dense<0.000000e+00> : vector<8x128xf32>
    %16 = tpu.matmul %14, %15, %cst_13 {dimension_numbers = #tpu.dot_dimension_numbers<[1], [0], [0], [1], [0, 0, 1, 1], [], []>} : vector<8x128xbf16>, vector<128x128xbf16>, vector<8x128xf32> -> vector<8x128xf32>
    %c0_14 = arith.constant 0 : index
    %c0_15 = arith.constant 0 : index
    %17 = vector.load %arg6[%c0_14, %c0_15] : memref<1x128xf32, #tpu.memory_space<vmem>>, vector<1x128xf32>
    %18 = vector.broadcast %17 : vector<1x128xf32> to vector<8x128xf32>
    %19 = arith.addf %16, %18 : vector<8x128xf32>
    %20 = vector.extract_strided_slice %19 {offsets = [0, 0], sizes = [8, 10], strides = [1, 1]} : vector<8x128xf32> to vector<8x10xf32>
    %c0_16 = arith.constant 0 : index
    %c0_17 = arith.constant 0 : index
    %21 = vector.load %arg8[%c0_16, %c0_17] : memref<8x10xf32, #tpu.memory_space<vmem>>, vector<8x10xf32>
    tpu.vector_store %arg8[%c0_16, %c0_17], %20 {strides = array<i32>} : memref<8x10xf32, #tpu.memory_space<vmem>>, vector<8x10xf32>,
    %22 = vector.extract_strided_slice %19 {offsets = [0, 63], sizes = [8, 3], strides = [1, 1]} : vector<8x128xf32> to vector<8x3xf32>
    %c0_18 = arith.constant 0 : index
    %c0_19 = arith.constant 0 : index
    %23 = vector.load %arg9[%c0_18, %c0_19] : memref<8x3xf32, #tpu.memory_space<vmem>>, vector<8x3xf32>
    tpu.vector_store %arg9[%c0_18, %c0_19], %22 {strides = array<i32>} : memref<8x3xf32, #tpu.memory_space<vmem>>, vector<8x3xf32>,
    %24 = tpu.iota {dimensions = array<i32: 1>} : vector<8x66xi32>
    %c63_i32 = arith.constant 63 : i32
    %25 = vector.broadcast %c63_i32 : i32 to vector<8x66xi32>
    %26 = arith.cmpi sge, %24, %25 : vector<8x66xi32>
    %c66_i32 = arith.constant 66 : i32
    %27 = vector.broadcast %c66_i32 : i32 to vector<8x66xi32>
    %28 = arith.cmpi slt, %24, %27 : vector<8x66xi32>
    %29 = arith.andi %26, %28 : vector<8x66xi1>
    %30 = vector.extract_strided_slice %19 {offsets = [0, 0], sizes = [8, 66], strides = [1, 1]} : vector<8x128xf32> to vector<8x66xf32>
    %c0_20 = arith.constant 0 : index
    %c0_21 = arith.constant 0 : index
    %31 = vector.load %arg7[%c0_20, %c0_21] : memref<8x66xf32, #tpu.memory_space<vmem>>, vector<8x66xf32>
    %32 = arith.select %29, %30, %31 : vector<8x66xi1>, vector<8x66xf32>
    %c0_22 = arith.constant 0 : index
    %c0_23 = arith.constant 0 : index
    %33 = vector.load %arg10[%c0_22, %c0_23] : memref<8x66xf32, #tpu.memory_space<vmem>>, vector<8x66xf32>
    tpu.vector_store %arg10[%c0_22, %c0_23], %32 {strides = array<i32>} : memref<8x66xf32, #tpu.memory_space<vmem>>, vector<8x66xf32>,
    return
  }
}

</mosaic_0001>

<llo_original>
// kernel: runner_forward.1
$region0: #{runner_forward.1}
  #allocation0 [shape = 'u32[]', space=smem, size = 0x4, offset = 0x4, fixed_abs, tag = 'smem constant byte address 0x4 - core index']
  #allocation1 [shape = 'u32[144,128]{1,0:T(1,128)}', space=vmem, size = 0x12000, scoped, tag = 'internal scratch']
  %s0 = inlined_call_operand.vmem [shape: f32[8,136], index: 0, kind: input, shape index: {}]
  %s1 = inlined_call_operand.vmem [shape: f32[8,10], index: 1, kind: input, shape index: {}]
  %s2 = inlined_call_operand.vmem [shape: bf16[136,128], index: 2, kind: input, shape index: {}]
  %s3 = inlined_call_operand.vmem [shape: bf16[10,128], index: 3, kind: input, shape index: {}]
  %s4 = inlined_call_operand.vmem [shape: f32[1,128], index: 4, kind: input, shape index: {}]
  %s5 = inlined_call_operand.vmem [shape: bf16[128,128], index: 5, kind: input, shape index: {}]
  %s6 = inlined_call_operand.vmem [shape: f32[1,128], index: 6, kind: input, shape index: {}]
  %s7 = inlined_call_operand.vmem [shape: f32[8,66], index: 7, kind: input, shape index: {}]
  %s8 = inlined_call_operand.hbm [shape: f32[8,10], index: 8, kind: output, shape index: {0}]
  %s9 = inlined_call_operand.vmem [shape: f32[8,3], index: 9, kind: output, shape index: {1}]
  %s10 = inlined_call_operand.hbm [shape: f32[8,66], index: 10, kind: output, shape index: {2}]
  %11 = xla_tuple %s8, %s9, %s10
  %s12 = sld [smem:[#allocation0]]
  $region58: #{runner_forward.1} parent=0
    _
  %s14 = ssub.s32 1, %s12
  %s15 = scalar_select 0, %s14, %s12
  $region1: #{runner_forward.1} parent=0
    #allocation2 [shape = 'u8[4096]{0}', space=vmem, size = 0x1000, scoped, tag = 'output window, operand 0, single buffered']
    #allocation3 [shape = 's32[1]{0}', space=sflag, size = 0x4, scoped, tag = 'scoped memory for runner_forward.1']
    #allocation4 [shape = 'u8[4096]{0}', space=vmem, size = 0x1000, scoped, tag = 'output window, operand 2, single buffered']
    #allocation5 [shape = 's32[1]{0}', space=sflag, size = 0x4, scoped, tag = 'scoped memory for runner_forward.1']
    %16 = vsyncpa [#allocation3], 0
    %17 = vsyncpa [#allocation5], 0
    // Predicated region
    $region2: #{runner_forward.1} parent=1 // pred_check
      _
    $region3: #{runner_forward.1} parent=1 // pred_check_branch
      %19 = sbr.rel (0) target = $region5
    $region4: #{runner_forward.1} parent=1 // pred_region
      _
    $region5: #{runner_forward.1} parent=1 // pred_fallthru
      _
    // Predicated region
    $region6: #{runner_forward.1} parent=1 // pred_check
      _
    $region7: #{runner_forward.1} parent=1 // pred_check_branch
      %21 = sbr.rel (0) target = $region9
    $region8: #{runner_forward.1} parent=1 // pred_region
      _
    $region9: #{runner_forward.1} parent=1 // pred_fallthru
      _
    // Predicated region
    $region10: #{runner_forward.1} parent=1 // pred_check
      _
    $region11: #{runner_forward.1} parent=1 // pred_check_branch
      %23 = sbr.rel (0) target = $region13
    $region12: #{runner_forward.1} parent=1 // pred_region
      _
    $region13: #{runner_forward.1} parent=1 // pred_fallthru
      _
    // Predicated region
    $region14: #{runner_forward.1} parent=1 // pred_check
      _
    $region15: #{runner_forward.1} parent=1 // pred_check_branch
      %25 = sbr.rel (0) target = $region17
    $region16: #{runner_forward.1} parent=1 // pred_region
      _
    $region17: #{runner_forward.1} parent=1 // pred_fallthru
      _
    // Predicated region
    $region18: #{runner_forward.1} parent=1 // pred_check
      _
    $region19: #{runner_forward.1} parent=1 // pred_check_branch
      %27 = sbr.rel (0) target = $region21
    $region20: #{runner_forward.1} parent=1 // pred_region
      _
    $region21: #{runner_forward.1} parent=1 // pred_fallthru
      _
    // Predicated region
    $region22: #{runner_forward.1} parent=1 // pred_check
      _
    $region23: #{runner_forward.1} parent=1 // pred_check_branch
      %29 = sbr.rel (0) target = $region25
    $region24: #{runner_forward.1} parent=1 // pred_region
      _
    $region25: #{runner_forward.1} parent=1 // pred_fallthru
      _
    // Predicated region
    $region26: #{runner_forward.1} parent=1 // pred_check
      _
    $region27: #{runner_forward.1} parent=1 // pred_check_branch
      %31 = sbr.rel (0) target = $region29
    $region28: #{runner_forward.1} parent=1 // pred_region
      _
    $region29: #{runner_forward.1} parent=1 // pred_fallthru
      _
    // Predicated region
    $region30: #{runner_forward.1} parent=1 // pred_check
      _
    $region31: #{runner_forward.1} parent=1 // pred_check_branch
      %33 = sbr.rel (0) target = $region33
    $region32: #{runner_forward.1} parent=1 // pred_region
      _
    $region33: #{runner_forward.1} parent=1 // pred_fallthru
      _
    %v35 = vld [vmem:[%s0] sm:$0xff]
    %v36 = vld [vmem:[%s0 + $0x8] sm:$0xff]
    %v37 = vpack.c.bf16 %v35, %v35
    %v38 = vpack.c.bf16 %v36, %v36
    %v39 = vld [vmem:[%s1] sm:$0xff]
    %v40 = vpack.c.bf16 %v39, %v39
    %v41 = vld [vmem:[%s2] sm:$0xf]
    %v42 = vld [vmem:[%s2 + $0x4] sm:$0xf]
    %v43 = vld [vmem:[%s2 + $0x8] sm:$0xf]
    %v44 = vld [vmem:[%s2 + $0xc] sm:$0xf]
    %v45 = vld [vmem:[%s2 + $0x10] sm:$0xf]
    %v46 = vld [vmem:[%s2 + $0x14] sm:$0xf]
    %v47 = vld [vmem:[%s2 + $0x18] sm:$0xf]
    %v48 = vld [vmem:[%s2 + $0x1c] sm:$0xf]
    %v49 = vld [vmem:[%s2 + $0x20] sm:$0xf]
    %v50 = vld [vmem:[%s2 + $0x24] sm:$0xf]
    %v51 = vld [vmem:[%s2 + $0x28] sm:$0xf]
    %v52 = vld [vmem:[%s2 + $0x2c] sm:$0xf]
    %v53 = vld [vmem:[%s2 + $0x30] sm:$0xf]
    %v54 = vld [vmem:[%s2 + $0x34] sm:$0xf]
    %v55 = vld [vmem:[%s2 + $0x38] sm:$0xf]
    %v56 = vld [vmem:[%s2 + $0x3c] sm:$0xf]
    %v57 = vld [vmem:[%s2 + $0x40] sm:$0xf]
    %v58 = vld [vmem:[%s3] sm:$0xf]
    %v59 = vld [vmem:[%s3 + $0x4] sm:$0x1]
    %v62 = vunpack.c.l.b16 %v58
    %v63 = vunpack.c.l.b16 %v59
    %v64 = vpack.c.b16 %v63, %v62
    %vm65 = vcmask 80896
    %v67 = vsel %vm65, %v40, 0
    %vm69 = vcmask 1044480
    %v71 = vsel %vm69, %v64, 0
    %73 = vmatprep.subr.bf16.mxu0 0
    %74 = vmatpush1.bf16.msra.mxu0 %v71
    %75 = vmatprep.subr.bf16.mxu0 0
    %76 = vmatpush1.bf16.msra.mxu0 0
    %77 = vmatprep.subr.bf16.mxu0 0
    %78 = vmatpush1.bf16.msra.mxu0 0
    %79 = vmatprep.subr.bf16.mxu0 0
    %80 = vmatpush1.bf16.msra.mxu0 0
    %81 = vmatprep.subr.bf16.mxu0 0
    %82 = vmatpush1.bf16.msra.mxu0 0
    %83 = vmatprep.subr.bf16.mxu0 0
    %84 = vmatpush1.bf16.msra.mxu0 0
    %85 = vmatprep.subr.bf16.mxu0 0
    %86 = vmatpush1.bf16.msra.mxu0 0
    %87 = vmatprep.subr.bf16.mxu0 0
    %88 = vmatpush1.bf16.msra.mxu0 0
    %89 = vmatprep.subr.bf16.mxu0 0
    %90 = vmatpush1.bf16.msra.mxu0 0
    %91 = vmatprep.subr.bf16.mxu0 0
    %92 = vmatpush1.bf16.msra.mxu0 0
    %93 = vmatprep.subr.bf16.mxu0 0
    %94 = vmatpush1.bf16.msra.mxu0 0
    %95 = vmatprep.subr.bf16.mxu0 0
    %96 = vmatpush1.bf16.msra.mxu0 0
    %97 = vmatprep.subr.bf16.mxu0 0
    %98 = vmatpush1.bf16.msra.mxu0 0
    %99 = vmatprep.subr.bf16.mxu0 0
    %100 = vmatpush1.bf16.msra.mxu0 0
    %101 = vmatprep.subr.bf16.mxu0 0
    %102 = vmatpush1.bf16.msra.mxu0 0
    %103 = vmatprep.subr.bf16.mxu0 0
    %104 = vmatpush1.bf16.msra.mxu0 0
    %105 = vmatprep.mubr.bf16.mxu0 0
    %106 = vmatmul.mubr.bf16.gmra.mrb[0].mxu0 %v67
    %v107 = vpop.f32.mrb[0].mxu0
    %v108 = vadd.f32 0.0, %v107
    %v109 = vpop.f32.mrb[0].mxu0
    %v110 = vpop.f32.mrb[0].mxu0
    %v111 = vpop.f32.mrb[0].mxu0
    %112 = vdwg.mxu0
    %v130 = vunpack.c.l.b16 %v41
    %v131 = vunpack.c.l.b16 %v42
    %v132 = vunpack.c.l.b16 %v43
    %v133 = vunpack.c.l.b16 %v44
    %v134 = vunpack.c.l.b16 %v45
    %v135 = vunpack.c.l.b16 %v46
    %v136 = vunpack.c.l.b16 %v47
    %v137 = vunpack.c.l.b16 %v48
    %v138 = vunpack.c.l.b16 %v49
    %v139 = vunpack.c.l.b16 %v50
    %v140 = vunpack.c.l.b16 %v51
    %v141 = vunpack.c.l.b16 %v52
    %v142 = vunpack.c.l.b16 %v53
    %v143 = vunpack.c.l.b16 %v54
    %v144 = vunpack.c.l.b16 %v55
    %v145 = vunpack.c.l.b16 %v56
    %v146 = vunpack.c.l.b16 %v57
    %v147 = vpack.c.b16 %v131, %v130
    %v148 = vpack.c.b16 %v133, %v132
    %v149 = vpack.c.b16 %v135, %v134
    %v150 = vpack.c.b16 %v137, %v136
    %v151 = vpack.c.b16 %v139, %v138
    %v152 = vpack.c.b16 %v141, %v140
    %v153 = vpack.c.b16 %v143, %v142
    %v154 = vpack.c.b16 %v145, %v144
    %v155 = vpack.c.b16 %v146, %v146
    %vm164 = vcmask 64512
    %v166 = vsel %vm164, %v38, 0
    %vm168 = vcmask 1043456
    %v170 = vsel %vm168, %v155, 0
    %172 = vmatprep.subr.bf16.mxu0 0
    %173 = vmatpush1.bf16.msra.mxu0 %v147
    %174 = vmatprep.subr.bf16.mxu0 0
    %175 = vmatpush1.bf16.msra.mxu0 %v148
    %176 = vmatprep.subr.bf16.mxu0 0
    %177 = vmatpush1.bf16.msra.mxu0 %v149
    %178 = vmatprep.subr.bf16.mxu0 0
    %179 = vmatpush1.bf16.msra.mxu0 %v150
    %180 = vmatprep.subr.bf16.mxu0 0
    %181 = vmatpush1.bf16.msra.mxu0 %v151
    %182 = vmatprep.subr.bf16.mxu0 0
    %183 = vmatpush1.bf16.msra.mxu0 %v152
    %184 = vmatprep.subr.bf16.mxu0 0
    %185 = vmatpush1.bf16.msra.mxu0 %v153
    %186 = vmatprep.subr.bf16.mxu0 0
    %187 = vmatpush1.bf16.msra.mxu0 %v154
    %188 = vmatprep.subr.bf16.mxu0 0
    %189 = vmatpush1.bf16.msra.mxu0 %v170
    %190 = vmatprep.subr.bf16.mxu0 0
    %191 = vmatpush1.bf16.msra.mxu0 0
    %192 = vmatprep.subr.bf16.mxu0 0
    %193 = vmatpush1.bf16.msra.mxu0 0
    %194 = vmatprep.subr.bf16.mxu0 0
    %195 = vmatpush1.bf16.msra.mxu0 0
    %196 = vmatprep.subr.bf16.mxu0 0
    %197 = vmatpush1.bf16.msra.mxu0 0
    %198 = vmatprep.subr.bf16.mxu0 0
    %199 = vmatpush1.bf16.msra.mxu0 0
    %200 = vmatprep.subr.bf16.mxu0 0
    %201 = vmatpush1.bf16.msra.mxu0 0
    %202 = vmatprep.subr.bf16.mxu0 0
    %203 = vmatpush1.bf16.msra.mxu0 0
    %204 = vmatprep.mubr.bf16.mxu0 %v166
    %205 = vmatmul.mubr.bf16.gmra.mrb[0].mxu0 %v37
    %v206 = vpop.f32.mrb[0].mxu0
    %v207 = vadd.f32 %v108, %v206
    %v208 = vpop.f32.mrb[0].mxu0
    %v209 = vpop.f32.mrb[0].mxu0
    %v210 = vpop.f32.mrb[0].mxu0
    %211 = vdwg.mxu0
    %v212 = vld [vmem:[%s4] sm:$0x1]
    %v214 = vlaneseq
    %v215 = vshrl.u32 %v214, 7
    %v216 = vsub.s32 0, %v215
    %v217 = vrot.slane %v212, %v216
    %v219 = vadd.f32 %v207, %v217
    %v220 = vmax.f32 %v219, 0.0
    %v221 = vpack.c.bf16 %v220, %v220
    %v222 = vld [vmem:[%s5] sm:$0xf]
    %v223 = vld [vmem:[%s5 + $0x4] sm:$0xf]
    %v224 = vld [vmem:[%s5 + $0x8] sm:$0xf]
    %v225 = vld [vmem:[%s5 + $0xc] sm:$0xf]
    %v226 = vld [vmem:[%s5 + $0x10] sm:$0xf]
    %v227 = vld [vmem:[%s5 + $0x14] sm:$0xf]
    %v228 = vld [vmem:[%s5 + $0x18] sm:$0xf]
    %v229 = vld [vmem:[%s5 + $0x1c] sm:$0xf]
    %v230 = vld [vmem:[%s5 + $0x20] sm:$0xf]
    %v231 = vld [vmem:[%s5 + $0x24] sm:$0xf]
    %v232 = vld [vmem:[%s5 + $0x28] sm:$0xf]
    %v233 = vld [vmem:[%s5 + $0x2c] sm:$0xf]
    %v234 = vld [vmem:[%s5 + $0x30] sm:$0xf]
    %v235 = vld [vmem:[%s5 + $0x34] sm:$0xf]
    %v236 = vld [vmem:[%s5 + $0x38] sm:$0xf]
    %v237 = vld [vmem:[%s5 + $0x3c] sm:$0xf]
    %v238 = vld [vmem:[%s6] sm:$0x1]
    %v240 = vlaneseq
    %v241 = vshrl.u32 %v240, 7
    %v242 = vsub.s32 0, %v241
    %v243 = vrot.slane %v238, %v242
    %v261 = vunpack.c.l.b16 %v222
    %v262 = vunpack.c.l.b16 %v223
    %v263 = vunpack.c.l.b16 %v224
    %v264 = vunpack.c.l.b16 %v225
    %v265 = vunpack.c.l.b16 %v226
    %v266 = vunpack.c.l.b16 %v227
    %v267 = vunpack.c.l.b16 %v228
    %v268 = vunpack.c.l.b16 %v229
    %v269 = vunpack.c.l.b16 %v230
    %v270 = vunpack.c.l.b16 %v231
    %v271 = vunpack.c.l.b16 %v232
    %v272 = vunpack.c.l.b16 %v233
    %v273 = vunpack.c.l.b16 %v234
    %v274 = vunpack.c.l.b16 %v235
    %v275 = vunpack.c.l.b16 %v236
    %v276 = vunpack.c.l.b16 %v237
    %v277 = vpack.c.b16 %v262, %v261
    %v278 = vpack.c.b16 %v264, %v263
    %v279 = vpack.c.b16 %v266, %v265
    %v280 = vpack.c.b16 %v268, %v267
    %v281 = vpack.c.b16 %v270, %v269
    %v282 = vpack.c.b16 %v272, %v271
    %v283 = vpack.c.b16 %v274, %v273
    %v284 = vpack.c.b16 %v276, %v275
    %293 = vmatprep.subr.bf16.mxu0 0
    %294 = vmatpush1.bf16.msra.mxu0 %v277
    %295 = vmatprep.subr.bf16.mxu0 0
    %296 = vmatpush1.bf16.msra.mxu0 %v278
    %297 = vmatprep.subr.bf16.mxu0 0
    %298 = vmatpush1.bf16.msra.mxu0 %v279
    %299 = vmatprep.subr.bf16.mxu0 0
    %300 = vmatpush1.bf16.msra.mxu0 %v280
    %301 = vmatprep.subr.bf16.mxu0 0
    %302 = vmatpush1.bf16.msra.mxu0 %v281
    %303 = vmatprep.subr.bf16.mxu0 0
    %304 = vmatpush1.bf16.msra.mxu0 %v282
    %305 = vmatprep.subr.bf16.mxu0 0
    %306 = vmatpush1.bf16.msra.mxu0 %v283
    %307 = vmatprep.subr.bf16.mxu0 0
    %308 = vmatpush1.bf16.msra.mxu0 %v284
    %309 = vmatprep.subr.bf16.mxu0 0
    %310 = vmatpush1.bf16.msra.mxu0 0
    %311 = vmatprep.subr.bf16.mxu0 0
    %312 = vmatpush1.bf16.msra.mxu0 0
    %313 = vmatprep.subr.bf16.mxu0 0
    %314 = vmatpush1.bf16.msra.mxu0 0
    %315 = vmatprep.subr.bf16.mxu0 0
    %316 = vmatpush1.bf16.msra.mxu0 0
    %317 = vmatprep.subr.bf16.mxu0 0
    %318 = vmatpush1.bf16.msra.mxu0 0
    %319 = vmatprep.subr.bf16.mxu0 0
    %320 = vmatpush1.bf16.msra.mxu0 0
    %321 = vmatprep.subr.bf16.mxu0 0
    %322 = vmatpush1.bf16.msra.mxu0 0
    %323 = vmatprep.subr.bf16.mxu0 0
    %324 = vmatpush1.bf16.msra.mxu0 0
    %325 = vmatprep.mubr.bf16.mxu0 0
    %326 = vmatmul.mubr.bf16.gmra.mrb[0].mxu0 %v221
    %v327 = vpop.f32.mrb[0].mxu0
    %v328 = vadd.f32 %v243, %v327
    %v329 = vpop.f32.mrb[0].mxu0
    %v330 = vpop.f32.mrb[0].mxu0
    %v331 = vpop.f32.mrb[0].mxu0
    %332 = vdwg.mxu0
    %333 = vst.msk [vmem:[#allocation2] sm:$0xff] %vm65, %v328
    %335 = vrot.lane.b32.xlu0 %v328, 65
    %v336 = vpop.permute.xlu0 %335
    %vm338 = vcmask 23552
    %339 = vst.msk [vmem:[%s9] sm:$0xff] %vm338, %v336
    %v340 = vlaneseq
    %v341 = vand.u32 %v340, 127
    %vm342 = vcmp.ge.s32.totalorder %v341, 63
    %vm343 = vcmp.lt.s32.totalorder %v341, 66
    %vm344 = vmand %vm342, %vm343
    %v345 = vld [vmem:[%s7] sm:$0xff]
    %v346 = vsel %vm344, %v328, %v345
    %vm347 = vcmask 539648
    %348 = vst.msk [vmem:[#allocation4] sm:$0xff] %vm347, %v346
    // Predicated region
    $region34: #{runner_forward.1} parent=1 // pred_check
      _
    $region35: #{runner_forward.1} parent=1 // pred_check_branch
      %350 = sbr.rel (0) target = $region37
    $region36: #{runner_forward.1} parent=1 // pred_region
      %s352 = ssub.s32 128, 128
      %353 = vsyncadd [#allocation3], %s352
      %s355 = sshll.u32 [#allocation2], 4
      %s356 = int_to_ptr.vmem [resolvable:$true] %s355
      %358 = dma.vmem_to_hbm [thread:$0]  %s356, 128, %s8, [#allocation3]
    $region37: #{runner_forward.1} parent=1 // pred_fallthru
      _
    // Predicated region
    $region38: #{runner_forward.1} parent=1 // pred_check
      _
    $region39: #{runner_forward.1} parent=1 // pred_check_branch
      %360 = sbr.rel (0) target = $region41
    $region40: #{runner_forward.1} parent=1 // pred_region
      _
    $region41: #{runner_forward.1} parent=1 // pred_fallthru
      _
    // Predicated region
    $region42: #{runner_forward.1} parent=1 // pred_check
      _
    $region43: #{runner_forward.1} parent=1 // pred_check_branch
      %362 = sbr.rel (0) target = $region45
    $region44: #{runner_forward.1} parent=1 // pred_region
      %s364 = ssub.s32 128, 128
      %365 = vsyncadd [#allocation5], %s364
      %s367 = sshll.u32 [#allocation4], 4
      %s368 = int_to_ptr.vmem [resolvable:$true] %s367
      %370 = dma.vmem_to_hbm [thread:$0]  %s368, 128, %s10, [#allocation5]
    $region45: #{runner_forward.1} parent=1 // pred_fallthru
      _
    // Predicated region
    $region46: #{runner_forward.1} parent=1 // pred_check
      _
    $region47: #{runner_forward.1} parent=1 // pred_check_branch
      %372 = sbr.rel (0) target = $region49
    $region48: #{runner_forward.1} parent=1 // pred_region
      %373 = dma.done [#allocation3], 128
    $region49: #{runner_forward.1} parent=1 // pred_fallthru
      _
    // Predicated region
    $region50: #{runner_forward.1} parent=1 // pred_check
      _
    $region51: #{runner_forward.1} parent=1 // pred_check_branch
      %375 = sbr.rel (0) target = $region53
    $region52: #{runner_forward.1} parent=1 // pred_region
      _
    $region53: #{runner_forward.1} parent=1 // pred_fallthru
      _
    // Predicated region
    $region54: #{runner_forward.1} parent=1 // pred_check
      _
    $region55: #{runner_forward.1} parent=1 // pred_check_branch
      %377 = sbr.rel (0) target = $region57
    $region56: #{runner_forward.1} parent=1 // pred_region
      %378 = dma.done [#allocation5], 128
    $region57: #{runner_forward.1} parent=1 // pred_fallthru
      _
    %379 = vsyncpa [#allocation3], 1
    %380 = vsyncpa [#allocation5], 1

</llo_original>
